<compile_context>
chip_gen: v7x
topology: tpu7x:2x2x1
jax: 0.10.0
libtpu: 0.0.40
codegen_flags: <defaults>
</compile_context>

<pallas_src>
import jax
import jax.numpy as jnp
from jax.experimental import pallas as pl
from jax.experimental.pallas import tpu as pltpu


def _sigmoid(z):
    # z is f32.  exp -> EUP, approximate reciprocal -> EUP; keeps the 4 VALU slots free.
    return pl.reciprocal(1.0 + jnp.exp(-z), approx=True)


def _mlp_kernel(x_ref, w1_ref, b1_ref, w2_ref, b2_ref, w3_ref, b3_ref, o_ref):
    """Fused 3-layer MLP on one batch tile.

    Activations: (features, TB) with batch on lanes.
    Weights are in torch layout (fan_out, fan_in); biases are (fan_out, 1).
    Computes   y.T = W3 @ sigmoid(W2 @ sigmoid(W1 @ x.T + b1) + b2) + b3
    which is exactly torch.nn.Linear chained as in NNRegress.forward, transposed.
    """
    mm_dtype = w1_ref.dtype
    x = x_ref[...]                                                       # (in, TB)
    z1 = jnp.dot(w1_ref[...], x, preferred_element_type=jnp.float32) + b1_ref[...]
    h1 = _sigmoid(z1).astype(mm_dtype)                                   # (h0, TB)
    z2 = jnp.dot(w2_ref[...], h1, preferred_element_type=jnp.float32) + b2_ref[...]
    h2 = _sigmoid(z2).astype(mm_dtype)                                   # (h1, TB)
    out = jnp.dot(w3_ref[...], h2, preferred_element_type=jnp.float32) + b3_ref[...]
    o_ref[...] = out.astype(o_ref.dtype)                                 # (out, TB)


def _round_up(n, m):
    return ((n + m - 1) // m) * m


def nn_regress_forward(x, params, *, block_b=2048, matmul_dtype=jnp.float32):
    """Fused NNRegress forward.

    x: (B, in_size) float32.
    params: torch-layout weights w{1,2,3}: (fan_out, fan_in), biases b{1,2,3}: (fan_out, 1).
    block_b: batch-tile size (rounded up to a multiple of 128 lanes) for large B.
    matmul_dtype: dtype fed to the MXU (f32 or bf16); accumulation / bias / sigmoid
                  always run in f32 (required on v5e, desirable everywhere).
    """
    B, in_size = x.shape
    out_size = params["w3"].shape[0]
    out_dtype = x.dtype

    # Batch on the lane (last) axis: transpose once here, transpose back at the end.
    xt = x.T.astype(matmul_dtype)                                        # (in, B)

    # Batch tile: whole batch if it fits one lane tile, otherwise a multiple of 128
    # so every load/store is unmasked; pad batch up to a tile multiple and slice after.
    if B <= 128:
        tb = B
        b_pad = B
    else:
        tb = min(_round_up(block_b, 128), _round_up(B, 128))
        b_pad = _round_up(B, tb)
    if b_pad != B:
        xt = jnp.pad(xt, ((0, 0), (0, b_pad - B)))

    w1 = params["w1"].astype(matmul_dtype)
    w2 = params["w2"].astype(matmul_dtype)
    w3 = params["w3"].astype(matmul_dtype)
    b1 = params["b1"].astype(jnp.float32)
    b2 = params["b2"].astype(jnp.float32)
    b3 = params["b3"].astype(jnp.float32)

    # Weights/biases: constant index_map -> DMA'd once, VMEM-resident across the grid.
    const = lambda shape: pl.BlockSpec(shape, lambda i: (0, 0))

    out_t = pl.pallas_call(
        _mlp_kernel,
        out_shape=jax.ShapeDtypeStruct((out_size, b_pad), out_dtype),
        grid=(b_pad // tb,),
        in_specs=[
            pl.BlockSpec((in_size, tb), lambda i: (0, i)),   # streamed batch tiles
            const(w1.shape), const(b1.shape),
            const(w2.shape), const(b2.shape),
            const(w3.shape), const(b3.shape),
        ],
        out_specs=pl.BlockSpec((out_size, tb), lambda i: (0, i)),
        compiler_params=pltpu.CompilerParams(
            dimension_semantics=("parallel",),               # megacore sharding on v7x
        ),
    )(xt, w1, b1, w2, b2, w3, b3)

    return out_t[:, :B].T                                    # back to (B, out_size)


def init_params(key, in_size, out_size, hidden_size):
    """Deterministic init mimicking torch.nn.Linear's U(-1/sqrt(fan_in), +1/sqrt(fan_in)).

    Torch layout: w (fan_out, fan_in), b stored as (fan_out, 1) for lane-broadcast adds.
    """
    dims = [in_size, hidden_size[0], hidden_size[1], out_size]
    params = {}
    for i in range(3):
        fan_in, fan_out = dims[i], dims[i + 1]
        key, kw, kb = jax.random.split(key, 3)
        bound = 1.0 / (fan_in ** 0.5)
        params[f"w{i+1}"] = jax.random.uniform(
            kw, (fan_out, fan_in), jnp.float32, minval=-bound, maxval=bound)
        params[f"b{i+1}"] = jax.random.uniform(
            kb, (fan_out, 1), jnp.float32, minval=-bound, maxval=bound)
    return params


def _reference(x, p):
    h1 = jax.nn.sigmoid(x @ p["w1"].T + p["b1"][:, 0])
    h2 = jax.nn.sigmoid(h1 @ p["w2"].T + p["b2"][:, 0])
    return h2 @ p["w3"].T + p["b3"][:, 0]


if __name__ == "__main__":
    key = jax.random.PRNGKey(0)
    in_size, out_size = 16, 4
    hidden_size = [32, 64]

    key, kp = jax.random.split(key)
    params = init_params(kp, in_size, out_size, hidden_size)

    # Small case: single tile, batch on lanes.
    key, kx = jax.random.split(key)
    x_small = jax.random.normal(kx, (8, in_size), jnp.float32)
    out_small = jax.block_until_ready(nn_regress_forward(x_small, params))
    ref_small = _reference(x_small, params)
    assert out_small.shape == (8, out_size)
    # Approx reciprocal in the sigmoid -> slightly relaxed tolerance vs exact f32 ref.
    assert jnp.allclose(out_small, ref_small, atol=2e-2, rtol=0.0)

    # Larger, non-multiple-of-128 batch: exercises padding + multi-step parallel grid
    # with VMEM-resident weights and pipelined x/out tiles.
    key, kx2 = jax.random.split(key)
    x_big = jax.random.normal(kx2, (300, in_size), jnp.float32)
    out_big = jax.block_until_ready(nn_regress_forward(x_big, params, block_b=128))
    ref_big = _reference(x_big, params)
    assert out_big.shape == (300, out_size)
    assert jnp.allclose(out_big, ref_big, atol=2e-2, rtol=0.0)

    # bf16 MXU operands (f32 accumulation, f32 bias+sigmoid) -> looser tolerance.
    out_bf16 = jax.block_until_ready(
        nn_regress_forward(x_big, params, block_b=128, matmul_dtype=jnp.bfloat16))
    assert jnp.allclose(out_bf16, ref_big, atol=1e-1, rtol=0.0)

    print("KERNEL_OK")
</pallas_src>

<mosaic_0001>
module attributes {stable_mosaic.version = 11 : i64} {
  func.func @_mlp_kernel(%arg0: i32, %arg1: memref<16x8xf32, #tpu.memory_space<vmem>>, %arg2: memref<32x16xf32, #tpu.memory_space<vmem>>, %arg3: memref<32x1xf32, #tpu.memory_space<vmem>>, %arg4: memref<64x32xf32, #tpu.memory_space<vmem>>, %arg5: memref<64x1xf32, #tpu.memory_space<vmem>>, %arg6: memref<4x64xf32, #tpu.memory_space<vmem>>, %arg7: memref<4x1xf32, #tpu.memory_space<vmem>>, %arg8: memref<4x8xf32, #tpu.memory_space<vmem>>) attributes {dimension_semantics = [#tpu.dimension_semantics<parallel>], iteration_bounds = array<i64: 1>, scalar_prefetch = 0 : i64, scratch_operands = 0 : i64, tpu.core_type = #tpu.core_type<tc>, window_params = [{transform_indices = @transform_0, window_bounds = array<i64: 16, 8>}, {pipeline_mode = #tpu.pipeline_mode<synchronous>, transform_indices = @transform_1, window_bounds = array<i64: 32, 16>}, {pipeline_mode = #tpu.pipeline_mode<synchronous>, transform_indices = @transform_2, window_bounds = array<i64: 32, 1>}, {pipeline_mode = #tpu.pipeline_mode<synchronous>, transform_indices = @transform_3, window_bounds = array<i64: 64, 32>}, {pipeline_mode = #tpu.pipeline_mode<synchronous>, transform_indices = @transform_4, window_bounds = array<i64: 64, 1>}, {pipeline_mode = #tpu.pipeline_mode<synchronous>, transform_indices = @transform_5, window_bounds = array<i64: 4, 64>}, {pipeline_mode = #tpu.pipeline_mode<synchronous>, transform_indices = @transform_6, window_bounds = array<i64: 4, 1>}, {transform_indices = @transform_7, window_bounds = array<i64: 4, 8>}]} {
    %c0 = arith.constant 0 : index
    %c0_0 = arith.constant 0 : index
    %0 = vector.load %arg1[%c0, %c0_0] : memref<16x8xf32, #tpu.memory_space<vmem>>, vector<16x8xf32>
    %c0_1 = arith.constant 0 : index
    %c0_2 = arith.constant 0 : index
    %1 = vector.load %arg2[%c0_1, %c0_2] : memref<32x16xf32, #tpu.memory_space<vmem>>, vector<32x16xf32>
    %cst = arith.constant dense<0.000000e+00> : vector<32x8xf32>
    %2 = tpu.matmul %1, %0, %cst {dimension_numbers = #tpu.dot_dimension_numbers<[1], [0], [0], [1], [0, 0, 1, 1], [], []>} : vector<32x16xf32>, vector<16x8xf32>, vector<32x8xf32> -> vector<32x8xf32>
    %c0_3 = arith.constant 0 : index
    %c0_4 = arith.constant 0 : index
    %3 = vector.load %arg3[%c0_3, %c0_4] : memref<32x1xf32, #tpu.memory_space<vmem>>, vector<32x1xf32>
    %4 = vector.broadcast %3 : vector<32x1xf32> to vector<32x8xf32>
    %5 = arith.addf %2, %4 : vector<32x8xf32>
    %cst_5 = arith.constant 0.000000e+00 : f32
    %6 = vector.broadcast %cst_5 : f32 to vector<32x8xf32>
    %7 = arith.subf %6, %5 : vector<32x8xf32>
    %8 = math.exp %7 : vector<32x8xf32>
    %cst_6 = arith.constant 1.000000e+00 : f32
    %9 = vector.broadcast %cst_6 : f32 to vector<32x8xf32>
    %10 = arith.addf %9, %8 : vector<32x8xf32>
    %11 = tpu.reciprocal %10 {approx = true} : vector<32x8xf32> -> vector<32x8xf32>
    %c0_7 = arith.constant 0 : index
    %c0_8 = arith.constant 0 : index
    %12 = vector.load %arg4[%c0_7, %c0_8] : memref<64x32xf32, #tpu.memory_space<vmem>>, vector<64x32xf32>
    %cst_9 = arith.constant dense<0.000000e+00> : vector<64x8xf32>
    %13 = tpu.matmul %12, %11, %cst_9 {dimension_numbers = #tpu.dot_dimension_numbers<[1], [0], [0], [1], [0, 0, 1, 1], [], []>} : vector<64x32xf32>, vector<32x8xf32>, vector<64x8xf32> -> vector<64x8xf32>
    %c0_10 = arith.constant 0 : index
    %c0_11 = arith.constant 0 : index
    %14 = vector.load %arg5[%c0_10, %c0_11] : memref<64x1xf32, #tpu.memory_space<vmem>>, vector<64x1xf32>
    %15 = vector.broadcast %14 : vector<64x1xf32> to vector<64x8xf32>
    %16 = arith.addf %13, %15 : vector<64x8xf32>
    %cst_12 = arith.constant 0.000000e+00 : f32
    %17 = vector.broadcast %cst_12 : f32 to vector<64x8xf32>
    %18 = arith.subf %17, %16 : vector<64x8xf32>
    %19 = math.exp %18 : vector<64x8xf32>
    %cst_13 = arith.constant 1.000000e+00 : f32
    %20 = vector.broadcast %cst_13 : f32 to vector<64x8xf32>
    %21 = arith.addf %20, %19 : vector<64x8xf32>
    %22 = tpu.reciprocal %21 {approx = true} : vector<64x8xf32> -> vector<64x8xf32>
    %c0_14 = arith.constant 0 : index
    %c0_15 = arith.constant 0 : index
    %23 = vector.load %arg6[%c0_14, %c0_15] : memref<4x64xf32, #tpu.memory_space<vmem>>, vector<4x64xf32>
    %cst_16 = arith.constant dense<0.000000e+00> : vector<4x8xf32>
    %24 = tpu.matmul %23, %22, %cst_16 {dimension_numbers = #tpu.dot_dimension_numbers<[1], [0], [0], [1], [0, 0, 1, 1], [], []>} : vector<4x64xf32>, vector<64x8xf32>, vector<4x8xf32> -> vector<4x8xf32>
    %c0_17 = arith.constant 0 : index
    %c0_18 = arith.constant 0 : index
    %25 = vector.load %arg7[%c0_17, %c0_18] : memref<4x1xf32, #tpu.memory_space<vmem>>, vector<4x1xf32>
    %26 = vector.broadcast %25 : vector<4x1xf32> to vector<4x8xf32>
    %27 = arith.addf %24, %26 : vector<4x8xf32>
    %c0_19 = arith.constant 0 : index
    %c0_20 = arith.constant 0 : index
    %28 = vector.load %arg8[%c0_19, %c0_20] : memref<4x8xf32, #tpu.memory_space<vmem>>, vector<4x8xf32>
    tpu.vector_store %arg8[%c0_19, %c0_20], %27 {strides = array<i32>} : memref<4x8xf32, #tpu.memory_space<vmem>>, vector<4x8xf32>,
    return
  }
  func.func @transform_0(%arg0: i32) -> (i32, i32) {
    %c0_i32 = arith.constant 0 : i32
    %c0_i32_0 = arith.constant 0 : i32
    return %c0_i32, %arg0 : i32, i32
  }
  func.func @transform_1(%arg0: i32) -> (i32, i32) {
    %c0_i32 = arith.constant 0 : i32
    %c0_i32_0 = arith.constant 0 : i32
    %c0_i32_1 = arith.constant 0 : i32
    return %c0_i32, %c0_i32_0 : i32, i32
  }
  func.func @transform_2(%arg0: i32) -> (i32, i32) {
    %c0_i32 = arith.constant 0 : i32
    %c0_i32_0 = arith.constant 0 : i32
    %c0_i32_1 = arith.constant 0 : i32
    return %c0_i32, %c0_i32_0 : i32, i32
  }
  func.func @transform_3(%arg0: i32) -> (i32, i32) {
    %c0_i32 = arith.constant 0 : i32
    %c0_i32_0 = arith.constant 0 : i32
    %c0_i32_1 = arith.constant 0 : i32
    return %c0_i32, %c0_i32_0 : i32, i32
  }
  func.func @transform_4(%arg0: i32) -> (i32, i32) {
    %c0_i32 = arith.constant 0 : i32
    %c0_i32_0 = arith.constant 0 : i32
    %c0_i32_1 = arith.constant 0 : i32
    return %c0_i32, %c0_i32_0 : i32, i32
  }
  func.func @transform_5(%arg0: i32) -> (i32, i32) {
    %c0_i32 = arith.constant 0 : i32
    %c0_i32_0 = arith.constant 0 : i32
    %c0_i32_1 = arith.constant 0 : i32
    return %c0_i32, %c0_i32_0 : i32, i32
  }
  func.func @transform_6(%arg0: i32) -> (i32, i32) {
    %c0_i32 = arith.constant 0 : i32
    %c0_i32_0 = arith.constant 0 : i32
    %c0_i32_1 = arith.constant 0 : i32
    return %c0_i32, %c0_i32_0 : i32, i32
  }
  func.func @transform_7(%arg0: i32) -> (i32, i32) {
    %c0_i32 = arith.constant 0 : i32
    %c0_i32_0 = arith.constant 0 : i32
    return %c0_i32, %arg0 : i32, i32
  }
}

</mosaic_0001>

<llo_original>
// kernel: tpu_custom_call.1
$region0: #{tpu_custom_call.1}
  #allocation0 [shape = 'u32[]', space=smem, size = 0x4, offset = 0x4, fixed_abs, tag = 'smem constant byte address 0x4 - core index']
  #allocation1 [shape = 'u32[144,128]{1,0:T(1,128)}', space=vmem, size = 0x12000, scoped, tag = 'internal scratch']
  %s0 = inlined_call_operand.vmem [shape: f32[16,8], index: 0, kind: input, shape index: {}]
  %s1 = inlined_call_operand.vmem [shape: f32[32,16], index: 1, kind: input, shape index: {}]
  %s2 = inlined_call_operand.vmem [shape: f32[32,1], index: 2, kind: input, shape index: {}]
  %s3 = inlined_call_operand.vmem [shape: f32[64,32], index: 3, kind: input, shape index: {}]
  %s4 = inlined_call_operand.vmem [shape: f32[64,1], index: 4, kind: input, shape index: {}]
  %s5 = inlined_call_operand.vmem [shape: f32[4,64], index: 5, kind: input, shape index: {}]
  %s6 = inlined_call_operand.vmem [shape: f32[4,1], index: 6, kind: input, shape index: {}]
  %s7 = inlined_call_operand.hbm [shape: f32[4,8], index: 7, kind: output, shape index: {}]
  %s8 = sld [smem:[#allocation0]]
  $region38: #{tpu_custom_call.1} parent=0
    _
  %s10 = ssub.s32 1, %s8
  %s11 = scalar_select 0, %s10, %s8
  $region1: #{tpu_custom_call.1} parent=0
    #allocation2 [shape = 'u8[2048]{0}', space=vmem, size = 0x800, scoped, tag = 'output window, operand 0, single buffered']
    #allocation3 [shape = 's32[1]{0}', space=sflag, size = 0x4, scoped, tag = 'scoped memory for tpu_custom_call.1']
    %12 = vsyncpa [#allocation3], 0
    // Predicated region
    $region2: #{tpu_custom_call.1} parent=1 // pred_check
      _
    $region3: #{tpu_custom_call.1} parent=1 // pred_check_branch
      %14 = sbr.rel (0) target = $region5
    $region4: #{tpu_custom_call.1} parent=1 // pred_region
      _
    $region5: #{tpu_custom_call.1} parent=1 // pred_fallthru
      _
    // Predicated region
    $region6: #{tpu_custom_call.1} parent=1 // pred_check
      _
    $region7: #{tpu_custom_call.1} parent=1 // pred_check_branch
      %16 = sbr.rel (0) target = $region9
    $region8: #{tpu_custom_call.1} parent=1 // pred_region
      _
    $region9: #{tpu_custom_call.1} parent=1 // pred_fallthru
      _
    // Predicated region
    $region10: #{tpu_custom_call.1} parent=1 // pred_check
      _
    $region11: #{tpu_custom_call.1} parent=1 // pred_check_branch
      %18 = sbr.rel (0) target = $region13
    $region12: #{tpu_custom_call.1} parent=1 // pred_region
      _
    $region13: #{tpu_custom_call.1} parent=1 // pred_fallthru
      _
    // Predicated region
    $region14: #{tpu_custom_call.1} parent=1 // pred_check
      _
    $region15: #{tpu_custom_call.1} parent=1 // pred_check_branch
      %20 = sbr.rel (0) target = $region17
    $region16: #{tpu_custom_call.1} parent=1 // pred_region
      _
    $region17: #{tpu_custom_call.1} parent=1 // pred_fallthru
      _
    // Predicated region
    $region18: #{tpu_custom_call.1} parent=1 // pred_check
      _
    $region19: #{tpu_custom_call.1} parent=1 // pred_check_branch
      %22 = sbr.rel (0) target = $region21
    $region20: #{tpu_custom_call.1} parent=1 // pred_region
      _
    $region21: #{tpu_custom_call.1} parent=1 // pred_fallthru
      _
    // Predicated region
    $region22: #{tpu_custom_call.1} parent=1 // pred_check
      _
    $region23: #{tpu_custom_call.1} parent=1 // pred_check_branch
      %24 = sbr.rel (0) target = $region25
    $region24: #{tpu_custom_call.1} parent=1 // pred_region
      _
    $region25: #{tpu_custom_call.1} parent=1 // pred_fallthru
      _
    // Predicated region
    $region26: #{tpu_custom_call.1} parent=1 // pred_check
      _
    $region27: #{tpu_custom_call.1} parent=1 // pred_check_branch
      %26 = sbr.rel (0) target = $region29
    $region28: #{tpu_custom_call.1} parent=1 // pred_region
      _
    $region29: #{tpu_custom_call.1} parent=1 // pred_fallthru
      _
    %v27 = vld [vmem:[%s0] sm:$0xff]
    %v28 = vld [vmem:[%s0 + $0x8] sm:$0xff]
    %v29 = vld [vmem:[%s1] sm:$0xff]
    %v30 = vld [vmem:[%s1 + $0x8] sm:$0xff]
    %v31 = vld [vmem:[%s1 + $0x10] sm:$0xff]
    %v32 = vld [vmem:[%s1 + $0x18] sm:$0xff]
    %v33 = vld [vmem:[%s2] sm:$0xff]
    %v34 = vld [vmem:[%s2 + $0x8] sm:$0xff]
    %v35 = vld [vmem:[%s2 + $0x10] sm:$0xff]
    %v36 = vld [vmem:[%s2 + $0x18] sm:$0xff]
    %38 = vset.pattern.permute.xlu0 0
    %39 = vperm.xlu0 %38, %v33
    %v40 = vpop.permute.xlu0 %39
    %43 = vset.pattern.permute.xlu0 0
    %44 = vperm.xlu0 %43, %v34
    %v45 = vpop.permute.xlu0 %44
    %48 = vset.pattern.permute.xlu0 0
    %49 = vperm.xlu0 %48, %v35
    %v50 = vpop.permute.xlu0 %49
    %53 = vset.pattern.permute.xlu0 0
    %54 = vperm.xlu0 %53, %v36
    %v55 = vpop.permute.xlu0 %54
    %vm57 = vcmask 130048
    %v59 = vsel %vm57, %v29, 0
    %v62 = vsel %vm57, %v30, 0
    %v65 = vsel %vm57, %v31, 0
    %v68 = vsel %vm57, %v32, 0
    %70 = vmatprep.subr.mxu0 0.0
    %71 = vmatpush1.msra.mxu0 %v27
    %72 = vmatprep.subr.mxu0 0.0
    %73 = vmatpush1.msra.mxu0 %v28
    %74 = vmatprep.subr.mxu0 0.0
    %75 = vmatpush1.msra.mxu0 0.0
    %76 = vmatprep.subr.mxu0 0.0
    %77 = vmatpush1.msra.mxu0 0.0
    %78 = vmatprep.subr.mxu0 0.0
    %79 = vmatpush1.msra.mxu0 0.0
    %80 = vmatprep.subr.mxu0 0.0
    %81 = vmatpush1.msra.mxu0 0.0
    %82 = vmatprep.subr.mxu0 0.0
    %83 = vmatpush1.msra.mxu0 0.0
    %84 = vmatprep.subr.mxu0 0.0
    %85 = vmatpush1.msra.mxu0 0.0
    %86 = vmatprep.subr.mxu0 0.0
    %87 = vmatpush1.msra.mxu0 0.0
    %88 = vmatprep.subr.mxu0 0.0
    %89 = vmatpush1.msra.mxu0 0.0
    %90 = vmatprep.subr.mxu0 0.0
    %91 = vmatpush1.msra.mxu0 0.0
    %92 = vmatprep.subr.mxu0 0.0
    %93 = vmatpush1.msra.mxu0 0.0
    %94 = vmatprep.subr.mxu0 0.0
    %95 = vmatpush1.msra.mxu0 0.0
    %96 = vmatprep.subr.mxu0 0.0
    %97 = vmatpush1.msra.mxu0 0.0
    %98 = vmatprep.subr.mxu0 0.0
    %99 = vmatpush1.msra.mxu0 0.0
    %100 = vmatprep.subr.mxu0 0.0
    %101 = vmatpush1.msra.mxu0 0.0
    %102 = vmatprep.subr.mxu0 0.0
    %103 = vmatpush1.msra.mxu0 0.0
    %104 = vmatprep.subr.mxu0 0.0
    %105 = vmatpush1.msra.mxu0 0.0
    %106 = vmatprep.subr.mxu0 0.0
    %107 = vmatpush1.msra.mxu0 0.0
    %108 = vmatprep.subr.mxu0 0.0
    %109 = vmatpush1.msra.mxu0 0.0
    %110 = vmatprep.subr.mxu0 0.0
    %111 = vmatpush1.msra.mxu0 0.0
    %112 = vmatprep.subr.mxu0 0.0
    %113 = vmatpush1.msra.mxu0 0.0
    %114 = vmatprep.subr.mxu0 0.0
    %115 = vmatpush1.msra.mxu0 0.0
    %116 = vmatprep.subr.mxu0 0.0
    %117 = vmatpush1.msra.mxu0 0.0
    %118 = vmatprep.subr.mxu0 0.0
    %119 = vmatpush1.msra.mxu0 0.0
    %120 = vmatprep.subr.mxu0 0.0
    %121 = vmatpush1.msra.mxu0 0.0
    %122 = vmatprep.subr.mxu0 0.0
    %123 = vmatpush1.msra.mxu0 0.0
    %124 = vmatprep.subr.mxu0 0.0
    %125 = vmatpush1.msra.mxu0 0.0
    %126 = vmatprep.subr.mxu0 0.0
    %127 = vmatpush1.msra.mxu0 0.0
    %128 = vmatprep.subr.mxu0 0.0
    %129 = vmatpush1.msra.mxu0 0.0
    %130 = vmatprep.subr.mxu0 0.0
    %131 = vmatpush1.msra.mxu0 0.0
    %132 = vmatprep.subr.mxu0 0.0
    %133 = vmatpush1.msra.mxu0 0.0
    %134 = vmatprep.mubr.f32.mxu0 0.0
    %135 = vmatmul.mubr.f32.gmra.mrb[0].mxu0 %v59
    %v136 = vpop.f32.mrb[0].mxu0
    %v137 = vadd.f32 %v40, %v136
    %v138 = vpop.f32.mrb[0].mxu0
    %139 = vmatprep.mubr.f32.mxu0 0.0
    %140 = vmatmul.mubr.f32.gmra.mrb[0].mxu0 %v62
    %v141 = vpop.f32.mrb[0].mxu0
    %v142 = vadd.f32 %v45, %v141
    %v143 = vpop.f32.mrb[0].mxu0
    %144 = vmatprep.mubr.f32.mxu0 0.0
    %145 = vmatmul.mubr.f32.gmra.mrb[0].mxu0 %v65
    %v146 = vpop.f32.mrb[0].mxu0
    %v147 = vadd.f32 %v50, %v146
    %v148 = vpop.f32.mrb[0].mxu0
    %149 = vmatprep.mubr.f32.mxu0 0.0
    %150 = vmatmul.mubr.f32.gmra.mrb[0].mxu0 %v68
    %v151 = vpop.f32.mrb[0].mxu0
    %v152 = vadd.f32 %v55, %v151
    %v153 = vpop.f32.mrb[0].mxu0
    %154 = vdwg.mxu0
    %v155 = vsub.f32 0.0, %v137
    %v156 = vsub.f32 0.0, %v142
    %v157 = vsub.f32 0.0, %v147
    %v158 = vsub.f32 0.0, %v152
    %v159 = vmul.f32 %v155, 1.442695
    %v160 = vpow.pop %v159
    %v161 = vmul.f32 %v156, 1.442695
    %v162 = vpow.pop %v161
    %v163 = vmul.f32 %v157, 1.442695
    %v164 = vpow.pop %v163
    %v165 = vmul.f32 %v158, 1.442695
    %v166 = vpow.pop %v165
    %v167 = vadd.f32 %v160, 1.0
    %v168 = vadd.f32 %v162, 1.0
    %v169 = vadd.f32 %v164, 1.0
    %v170 = vadd.f32 %v166, 1.0
    %v171 = vrcp.pop %v167
    %v172 = vrcp.pop %v168
    %v173 = vrcp.pop %v169
    %v174 = vrcp.pop %v170
    %v175 = vld [vmem:[%s3] sm:$0xff]
    %v176 = vld [vmem:[%s3 + $0x8] sm:$0xff]
    %v177 = vld [vmem:[%s3 + $0x10] sm:$0xff]
    %v178 = vld [vmem:[%s3 + $0x18] sm:$0xff]
    %v179 = vld [vmem:[%s3 + $0x20] sm:$0xff]
    %v180 = vld [vmem:[%s3 + $0x28] sm:$0xff]
    %v181 = vld [vmem:[%s3 + $0x30] sm:$0xff]
    %v182 = vld [vmem:[%s3 + $0x38] sm:$0xff]
    %v183 = vld [vmem:[%s4] sm:$0xff]
    %v184 = vld [vmem:[%s4 + $0x8] sm:$0xff]
    %v185 = vld [vmem:[%s4 + $0x10] sm:$0xff]
    %v186 = vld [vmem:[%s4 + $0x18] sm:$0xff]
    %v187 = vld [vmem:[%s4 + $0x20] sm:$0xff]
    %v188 = vld [vmem:[%s4 + $0x28] sm:$0xff]
    %v189 = vld [vmem:[%s4 + $0x30] sm:$0xff]
    %v190 = vld [vmem:[%s4 + $0x38] sm:$0xff]
    %192 = vset.pattern.permute.xlu0 0
    %193 = vperm.xlu0 %192, %v183
    %v194 = vpop.permute.xlu0 %193
    %197 = vset.pattern.permute.xlu0 0
    %198 = vperm.xlu0 %197, %v184
    %v199 = vpop.permute.xlu0 %198
    %202 = vset.pattern.permute.xlu0 0
    %203 = vperm.xlu0 %202, %v185
    %v204 = vpop.permute.xlu0 %203
    %207 = vset.pattern.permute.xlu0 0
    %208 = vperm.xlu0 %207, %v186
    %v209 = vpop.permute.xlu0 %208
    %212 = vset.pattern.permute.xlu0 0
    %213 = vperm.xlu0 %212, %v187
    %v214 = vpop.permute.xlu0 %213
    %217 = vset.pattern.permute.xlu0 0
    %218 = vperm.xlu0 %217, %v188
    %v219 = vpop.permute.xlu0 %218
    %222 = vset.pattern.permute.xlu0 0
    %223 = vperm.xlu0 %222, %v189
    %v224 = vpop.permute.xlu0 %223
    %227 = vset.pattern.permute.xlu0 0
    %228 = vperm.xlu0 %227, %v190
    %v229 = vpop.permute.xlu0 %228
    %vm231 = vcmask 261120
    %v233 = vsel %vm231, %v175, 0
    %v236 = vsel %vm231, %v176, 0
    %v239 = vsel %vm231, %v177, 0
    %v242 = vsel %vm231, %v178, 0
    %v245 = vsel %vm231, %v179, 0
    %v248 = vsel %vm231, %v180, 0
    %v251 = vsel %vm231, %v181, 0
    %v254 = vsel %vm231, %v182, 0
    %256 = vmatprep.subr.mxu0 0.0
    %257 = vmatpush1.msra.mxu0 %v171
    %258 = vmatprep.subr.mxu0 0.0
    %259 = vmatpush1.msra.mxu0 %v172
    %260 = vmatprep.subr.mxu0 0.0
    %261 = vmatpush1.msra.mxu0 %v173
    %262 = vmatprep.subr.mxu0 0.0
    %263 = vmatpush1.msra.mxu0 %v174
    %264 = vmatprep.subr.mxu0 0.0
    %265 = vmatpush1.msra.mxu0 0.0
    %266 = vmatprep.subr.mxu0 0.0
    %267 = vmatpush1.msra.mxu0 0.0
    %268 = vmatprep.subr.mxu0 0.0
    %269 = vmatpush1.msra.mxu0 0.0
    %270 = vmatprep.subr.mxu0 0.0
    %271 = vmatpush1.msra.mxu0 0.0
    %272 = vmatprep.subr.mxu0 0.0
    %273 = vmatpush1.msra.mxu0 0.0
    %274 = vmatprep.subr.mxu0 0.0
    %275 = vmatpush1.msra.mxu0 0.0
    %276 = vmatprep.subr.mxu0 0.0
    %277 = vmatpush1.msra.mxu0 0.0
    %278 = vmatprep.subr.mxu0 0.0
    %279 = vmatpush1.msra.mxu0 0.0
    %280 = vmatprep.subr.mxu0 0.0
    %281 = vmatpush1.msra.mxu0 0.0
    %282 = vmatprep.subr.mxu0 0.0
    %283 = vmatpush1.msra.mxu0 0.0
    %284 = vmatprep.subr.mxu0 0.0
    %285 = vmatpush1.msra.mxu0 0.0
    %286 = vmatprep.subr.mxu0 0.0
    %287 = vmatpush1.msra.mxu0 0.0
    %288 = vmatprep.subr.mxu0 0.0
    %289 = vmatpush1.msra.mxu0 0.0
    %290 = vmatprep.subr.mxu0 0.0
    %291 = vmatpush1.msra.mxu0 0.0
    %292 = vmatprep.subr.mxu0 0.0
    %293 = vmatpush1.msra.mxu0 0.0
    %294 = vmatprep.subr.mxu0 0.0
    %295 = vmatpush1.msra.mxu0 0.0
    %296 = vmatprep.subr.mxu0 0.0
    %297 = vmatpush1.msra.mxu0 0.0
    %298 = vmatprep.subr.mxu0 0.0
    %299 = vmatpush1.msra.mxu0 0.0
    %300 = vmatprep.subr.mxu0 0.0
    %301 = vmatpush1.msra.mxu0 0.0
    %302 = vmatprep.subr.mxu0 0.0
    %303 = vmatpush1.msra.mxu0 0.0
    %304 = vmatprep.subr.mxu0 0.0
    %305 = vmatpush1.msra.mxu0 0.0
    %306 = vmatprep.subr.mxu0 0.0
    %307 = vmatpush1.msra.mxu0 0.0
    %308 = vmatprep.subr.mxu0 0.0
    %309 = vmatpush1.msra.mxu0 0.0
    %310 = vmatprep.subr.mxu0 0.0
    %311 = vmatpush1.msra.mxu0 0.0
    %312 = vmatprep.subr.mxu0 0.0
    %313 = vmatpush1.msra.mxu0 0.0
    %314 = vmatprep.subr.mxu0 0.0
    %315 = vmatpush1.msra.mxu0 0.0
    %316 = vmatprep.subr.mxu0 0.0
    %317 = vmatpush1.msra.mxu0 0.0
    %318 = vmatprep.subr.mxu0 0.0
    %319 = vmatpush1.msra.mxu0 0.0
    %320 = vmatprep.mubr.f32.mxu0 0.0
    %321 = vmatmul.mubr.f32.gmra.mrb[0].mxu0 %v233
    %v322 = vpop.f32.mrb[0].mxu0
    %v323 = vadd.f32 %v194, %v322
    %v324 = vpop.f32.mrb[0].mxu0
    %325 = vmatprep.mubr.f32.mxu0 0.0
    %326 = vmatmul.mubr.f32.gmra.mrb[0].mxu0 %v236
    %v327 = vpop.f32.mrb[0].mxu0
    %v328 = vadd.f32 %v199, %v327
    %v329 = vpop.f32.mrb[0].mxu0
    %330 = vmatprep.mubr.f32.mxu0 0.0
    %331 = vmatmul.mubr.f32.gmra.mrb[0].mxu0 %v239
    %v332 = vpop.f32.mrb[0].mxu0
    %v333 = vadd.f32 %v204, %v332
    %v334 = vpop.f32.mrb[0].mxu0
    %335 = vmatprep.mubr.f32.mxu0 0.0
    %336 = vmatmul.mubr.f32.gmra.mrb[0].mxu0 %v242
    %v337 = vpop.f32.mrb[0].mxu0
    %v338 = vadd.f32 %v209, %v337
    %v339 = vpop.f32.mrb[0].mxu0
    %340 = vmatprep.mubr.f32.mxu0 0.0
    %341 = vmatmul.mubr.f32.gmra.mrb[0].mxu0 %v245
    %v342 = vpop.f32.mrb[0].mxu0
    %v343 = vadd.f32 %v214, %v342
    %v344 = vpop.f32.mrb[0].mxu0
    %345 = vmatprep.mubr.f32.mxu0 0.0
    %346 = vmatmul.mubr.f32.gmra.mrb[0].mxu0 %v248
    %v347 = vpop.f32.mrb[0].mxu0
    %v348 = vadd.f32 %v219, %v347
    %v349 = vpop.f32.mrb[0].mxu0
    %350 = vmatprep.mubr.f32.mxu0 0.0
    %351 = vmatmul.mubr.f32.gmra.mrb[0].mxu0 %v251
    %v352 = vpop.f32.mrb[0].mxu0
    %v353 = vadd.f32 %v224, %v352
    %v354 = vpop.f32.mrb[0].mxu0
    %355 = vmatprep.mubr.f32.mxu0 0.0
    %356 = vmatmul.mubr.f32.gmra.mrb[0].mxu0 %v254
    %v357 = vpop.f32.mrb[0].mxu0
    %v358 = vadd.f32 %v229, %v357
    %v359 = vpop.f32.mrb[0].mxu0
    %360 = vdwg.mxu0
    %v361 = vsub.f32 0.0, %v323
    %v362 = vsub.f32 0.0, %v328
    %v363 = vsub.f32 0.0, %v333
    %v364 = vsub.f32 0.0, %v338
    %v365 = vsub.f32 0.0, %v343
    %v366 = vsub.f32 0.0, %v348
    %v367 = vsub.f32 0.0, %v353
    %v368 = vsub.f32 0.0, %v358
    %v369 = vmul.f32 %v361, 1.442695
    %v370 = vpow.pop %v369
    %v371 = vmul.f32 %v362, 1.442695
    %v372 = vpow.pop %v371
    %v373 = vmul.f32 %v363, 1.442695
    %v374 = vpow.pop %v373
    %v375 = vmul.f32 %v364, 1.442695
    %v376 = vpow.pop %v375
    %v377 = vmul.f32 %v365, 1.442695
    %v378 = vpow.pop %v377
    %v379 = vmul.f32 %v366, 1.442695
    %v380 = vpow.pop %v379
    %v381 = vmul.f32 %v367, 1.442695
    %v382 = vpow.pop %v381
    %v383 = vmul.f32 %v368, 1.442695
    %v384 = vpow.pop %v383
    %v385 = vadd.f32 %v370, 1.0
    %v386 = vadd.f32 %v372, 1.0
    %v387 = vadd.f32 %v374, 1.0
    %v388 = vadd.f32 %v376, 1.0
    %v389 = vadd.f32 %v378, 1.0
    %v390 = vadd.f32 %v380, 1.0
    %v391 = vadd.f32 %v382, 1.0
    %v392 = vadd.f32 %v384, 1.0
    %v393 = vrcp.pop %v385
    %v394 = vrcp.pop %v386
    %v395 = vrcp.pop %v387
    %v396 = vrcp.pop %v388
    %v397 = vrcp.pop %v389
    %v398 = vrcp.pop %v390
    %v399 = vrcp.pop %v391
    %v400 = vrcp.pop %v392
    %v401 = vld [vmem:[%s5] sm:$0xf]
    %v402 = vld [vmem:[%s6] sm:$0xf]
    %404 = vset.pattern.permute.xlu0 0
    %405 = vperm.xlu0 %404, %v402
    %v406 = vpop.permute.xlu0 %405
    %vm408 = vcmask 523264
    %v410 = vsel %vm408, %v401, 0
    %412 = vmatprep.subr.mxu0 0.0
    %413 = vmatpush1.msra.mxu0 %v393
    %414 = vmatprep.subr.mxu0 0.0
    %415 = vmatpush1.msra.mxu0 %v394
    %416 = vmatprep.subr.mxu0 0.0
    %417 = vmatpush1.msra.mxu0 %v395
    %418 = vmatprep.subr.mxu0 0.0
    %419 = vmatpush1.msra.mxu0 %v396
    %420 = vmatprep.subr.mxu0 0.0
    %421 = vmatpush1.msra.mxu0 %v397
    %422 = vmatprep.subr.mxu0 0.0
    %423 = vmatpush1.msra.mxu0 %v398
    %424 = vmatprep.subr.mxu0 0.0
    %425 = vmatpush1.msra.mxu0 %v399
    %426 = vmatprep.subr.mxu0 0.0
    %427 = vmatpush1.msra.mxu0 %v400
    %428 = vmatprep.subr.mxu0 0.0
    %429 = vmatpush1.msra.mxu0 0.0
    %430 = vmatprep.subr.mxu0 0.0
    %431 = vmatpush1.msra.mxu0 0.0
    %432 = vmatprep.subr.mxu0 0.0
    %433 = vmatpush1.msra.mxu0 0.0
    %434 = vmatprep.subr.mxu0 0.0
    %435 = vmatpush1.msra.mxu0 0.0
    %436 = vmatprep.subr.mxu0 0.0
    %437 = vmatpush1.msra.mxu0 0.0
    %438 = vmatprep.subr.mxu0 0.0
    %439 = vmatpush1.msra.mxu0 0.0
    %440 = vmatprep.subr.mxu0 0.0
    %441 = vmatpush1.msra.mxu0 0.0
    %442 = vmatprep.subr.mxu0 0.0
    %443 = vmatpush1.msra.mxu0 0.0
    %444 = vmatprep.subr.mxu0 0.0
    %445 = vmatpush1.msra.mxu0 0.0
    %446 = vmatprep.subr.mxu0 0.0
    %447 = vmatpush1.msra.mxu0 0.0
    %448 = vmatprep.subr.mxu0 0.0
    %449 = vmatpush1.msra.mxu0 0.0
    %450 = vmatprep.subr.mxu0 0.0
    %451 = vmatpush1.msra.mxu0 0.0
    %452 = vmatprep.subr.mxu0 0.0
    %453 = vmatpush1.msra.mxu0 0.0
    %454 = vmatprep.subr.mxu0 0.0
    %455 = vmatpush1.msra.mxu0 0.0
    %456 = vmatprep.subr.mxu0 0.0
    %457 = vmatpush1.msra.mxu0 0.0
    %458 = vmatprep.subr.mxu0 0.0
    %459 = vmatpush1.msra.mxu0 0.0
    %460 = vmatprep.subr.mxu0 0.0
    %461 = vmatpush1.msra.mxu0 0.0
    %462 = vmatprep.subr.mxu0 0.0
    %463 = vmatpush1.msra.mxu0 0.0
    %464 = vmatprep.subr.mxu0 0.0
    %465 = vmatpush1.msra.mxu0 0.0
    %466 = vmatprep.subr.mxu0 0.0
    %467 = vmatpush1.msra.mxu0 0.0
    %468 = vmatprep.subr.mxu0 0.0
    %469 = vmatpush1.msra.mxu0 0.0
    %470 = vmatprep.subr.mxu0 0.0
    %471 = vmatpush1.msra.mxu0 0.0
    %472 = vmatprep.subr.mxu0 0.0
    %473 = vmatpush1.msra.mxu0 0.0
    %474 = vmatprep.subr.mxu0 0.0
    %475 = vmatpush1.msra.mxu0 0.0
    %476 = vmatprep.mubr.f32.mxu0 0.0
    %477 = vmatmul.mubr.f32.gmra.mrb[0].mxu0 %v410
    %v478 = vpop.f32.mrb[0].mxu0
    %v479 = vadd.f32 %v406, %v478
    %v480 = vpop.f32.mrb[0].mxu0
    %481 = vdwg.mxu0
    %vm482 = vcmask 60416
    %483 = vst.msk [vmem:[#allocation2] sm:$0xf] %vm482, %v479
    // Predicated region
    $region30: #{tpu_custom_call.1} parent=1 // pred_check
      _
    $region31: #{tpu_custom_call.1} parent=1 // pred_check_branch
      %485 = sbr.rel (0) target = $region33
    $region32: #{tpu_custom_call.1} parent=1 // pred_region
      %s487 = ssub.s32 64, 64
      %488 = vsyncadd [#allocation3], %s487
      %s490 = sshll.u32 [#allocation2], 4
      %s491 = int_to_ptr.vmem [resolvable:$true] %s490
      %493 = dma.vmem_to_hbm [thread:$0]  %s491, 64, %s7, [#allocation3]
    $region33: #{tpu_custom_call.1} parent=1 // pred_fallthru
      _
    // Predicated region
    $region34: #{tpu_custom_call.1} parent=1 // pred_check
      _
    $region35: #{tpu_custom_call.1} parent=1 // pred_check_branch
      %495 = sbr.rel (0) target = $region37
    $region36: #{tpu_custom_call.1} parent=1 // pred_region
      %496 = dma.done [#allocation3], 64
    $region37: #{tpu_custom_call.1} parent=1 // pred_fallthru
      _
    %497 = vsyncpa [#allocation3], 1

</llo_original>
